<compile_context>
chip_gen: v7x
topology: tpu7x:2x2x1
jax: 0.10.0
libtpu: 0.0.40
codegen_flags: <defaults>
</compile_context>

<pallas_src>
import math

import jax
import jax.numpy as jnp
from jax import lax
from jax.experimental import pallas as pl
from jax.experimental.pallas import tpu as pltpu

_INV_SQRT2 = 1.0 / math.sqrt(2.0)


def _make_fidelity_kernel(esp: float, B: int, TM: int, TN: int, needs_mask: bool):
    def kernel(yp_col_ref, yt_col_ref, yp_row_ref, yt_row_ref, out_ref):
        yp_c = yp_col_ref[...]      # (TM, 1)  scores, row index i on sublanes
        yt_c = yt_col_ref[...]      # (TM, 1)
        yp_r = yp_row_ref[...]      # (1, TN)  scores, col index j on lanes
        yt_r = yt_row_ref[...]      # (1, TN)

        # Fold p in {0,1} into the sign of the erf argument:
        #   loss_ij = (1 - sqrt(esp)) - sqrt(0.5*(1 + erf(s*diff)) + esp)
        # where s = +1 if y_true[i] - y_true[j] >= 0 else -1.
        scale = jnp.where((yt_c - yt_r) >= 0.0, _INV_SQRT2, -_INV_SQRT2)  # (TM, TN)
        arg = (yp_c - yp_r) * scale                                       # (TM, TN)
        sel = 0.5 + 0.5 * lax.erf(arg)                                    # p_hat or 1-p_hat
        term = jnp.sqrt(sel + esp)                                        # (TM, TN)

        if needs_mask:
            # Boundary masking against the lane-padded region (only emitted
            # when B < Bp). Column mask is folded into the lane reduction;
            # row mask is a tiny (TM, 1) multiply.
            i = pl.program_id(0)
            j = pl.program_id(1)
            col_ids = j * TN + lax.broadcasted_iota(jnp.int32, (1, TN), 1)
            row_ids = i * TM + lax.broadcasted_iota(jnp.int32, (TM, 1), 0)
            col_mask = (col_ids < B).astype(jnp.float32)                  # (1, TN)
            row_mask = (row_ids < B).astype(jnp.float32)                  # (TM, 1)
            row_sums = jnp.sum(term * col_mask, axis=1, keepdims=True)    # (TM, 1)
            out_ref[...] = jnp.sum(row_sums * row_mask, axis=0, keepdims=True)
        else:
            row_sums = jnp.sum(term, axis=1, keepdims=True)               # (TM, 1)
            out_ref[...] = jnp.sum(row_sums, axis=0, keepdims=True)

    return kernel


def _pick_tile(Bp: int, target: int) -> int:
    """Largest tile <= target that divides Bp (Bp is a multiple of 128)."""
    t = min(target, Bp)
    while Bp % t != 0:
        t //= 2
    return t


def fidelity_loss(y_pred: jax.Array, y_true: jax.Array, esp: float = 1e-6) -> jax.Array:
    """y_pred, y_true: (B, 1) float32. Returns scalar float32 loss."""
    B = y_pred.shape[0]
    Bp = ((B + 127) // 128) * 128          # pad pairwise extent to a lane multiple
    TM = _pick_tile(Bp, 256)               # row-tile (sublane axis)
    TN = _pick_tile(Bp, 2048)              # col-tile (lane axis), VMEM-safe on v7x
    num_i, num_j = Bp // TM, Bp // TN

    yp = jnp.pad(y_pred.reshape(B).astype(jnp.float32), (0, Bp - B))
    yt = jnp.pad(y_true.reshape(B).astype(jnp.float32), (0, Bp - B))
    yp_col, yp_row = yp.reshape(Bp, 1), yp.reshape(1, Bp)
    yt_col, yt_row = yt.reshape(Bp, 1), yt.reshape(1, Bp)

    kernel = _make_fidelity_kernel(float(esp), B, TM, TN, B < Bp)

    n_elem = Bp * Bp
    cost = pl.CostEstimate(
        flops=12 * n_elem,                  # VPU work per element (ex-erf)
        transcendentals=2 * n_elem,         # erf + sqrt per element
        bytes_accessed=(2 * TM + 2 * TN) * 4 * num_i * num_j + 4 * num_i * num_j,
    )

    partials = pl.pallas_call(
        kernel,
        out_shape=jax.ShapeDtypeStruct((num_i, num_j, 1, 1), jnp.float32),
        grid=(num_i, num_j),
        in_specs=[
            pl.BlockSpec((TM, 1), lambda i, j: (i, 0)),   # y_pred column slab
            pl.BlockSpec((TM, 1), lambda i, j: (i, 0)),   # y_true column slab
            pl.BlockSpec((1, TN), lambda i, j: (0, j)),   # y_pred row slab
            pl.BlockSpec((1, TN), lambda i, j: (0, j)),   # y_true row slab
        ],
        out_specs=pl.BlockSpec((None, None, 1, 1), lambda i, j: (i, j, 0, 0)),
        compiler_params=pltpu.CompilerParams(
            dimension_semantics=("parallel", "parallel")),
        cost_estimate=cost,
    )(yp_col, yt_col, yp_row, yt_row)

    total = jnp.sum(partials)
    # Hoisted constant term: every valid pair contributes (1 - sqrt(esp)).
    return (1.0 - math.sqrt(esp)) - total * (1.0 / float(B * B))


def _fidelity_loss_ref(y_pred, y_true, esp=1e-6):
    """Pure-JAX reference mirroring the PyTorch forward."""
    B = y_pred.shape[0]
    yp = y_pred.reshape(B).astype(jnp.float32)
    yt = y_true.reshape(B).astype(jnp.float32)
    diff = (yp[:, None] - yp[None, :]) / math.sqrt(2.0)
    p_hat = 0.5 * (1.0 + lax.erf(diff))
    p = (yt[:, None] - yt[None, :] >= 0).astype(jnp.float32)
    loss = 1.0 - jnp.sqrt(p * p_hat + esp) - jnp.sqrt((1.0 - p) * (1.0 - p_hat) + esp)
    return jnp.mean(loss)


if __name__ == "__main__":
    key = jax.random.PRNGKey(0)
    k1, k2 = jax.random.split(key)
    B = 8
    y_pred = jax.random.normal(k1, (B, 1), dtype=jnp.float32)
    y_true = jax.random.normal(k2, (B, 1), dtype=jnp.float32)

    out = fidelity_loss(y_pred, y_true)
    out = jax.block_until_ready(out)

    ref = _fidelity_loss_ref(y_pred, y_true)
    assert jnp.allclose(out, ref, atol=1e-5, rtol=1e-5), (out, ref)

    print("KERNEL_OK")
</pallas_src>

<mosaic_0001>
module attributes {stable_mosaic.version = 11 : i64} {
  func.func @kernel(%arg0: i32, %arg1: i32, %arg2: memref<128x1xf32, #tpu.memory_space<vmem>>, %arg3: memref<128x1xf32, #tpu.memory_space<vmem>>, %arg4: memref<1x128xf32, #tpu.memory_space<vmem>>, %arg5: memref<1x128xf32, #tpu.memory_space<vmem>>, %arg6: memref<1x1x1x1xf32, #tpu.memory_space<vmem>>) attributes {dimension_semantics = [#tpu.dimension_semantics<parallel>, #tpu.dimension_semantics<parallel>], iteration_bounds = array<i64: 1, 1>, scalar_prefetch = 0 : i64, scratch_operands = 0 : i64, tpu.core_type = #tpu.core_type<tc>, window_params = [{transform_indices = @transform_0, window_bounds = array<i64: 128, 1>}, {transform_indices = @transform_1, window_bounds = array<i64: 128, 1>}, {transform_indices = @transform_2, window_bounds = array<i64: 1, 128>}, {transform_indices = @transform_3, window_bounds = array<i64: 1, 128>}, {transform_indices = @transform_4, window_bounds = array<i64: 1, 1, 1, 1>}]} {
    %c0 = arith.constant 0 : index
    %c0_0 = arith.constant 0 : index
    %0 = vector.load %arg2[%c0, %c0_0] : memref<128x1xf32, #tpu.memory_space<vmem>>, vector<128x1xf32>
    %c0_1 = arith.constant 0 : index
    %c0_2 = arith.constant 0 : index
    %1 = vector.load %arg3[%c0_1, %c0_2] : memref<128x1xf32, #tpu.memory_space<vmem>>, vector<128x1xf32>
    %c0_3 = arith.constant 0 : index
    %c0_4 = arith.constant 0 : index
    %2 = vector.load %arg4[%c0_3, %c0_4] : memref<1x128xf32, #tpu.memory_space<vmem>>, vector<1x128xf32>
    %c0_5 = arith.constant 0 : index
    %c0_6 = arith.constant 0 : index
    %3 = vector.load %arg5[%c0_5, %c0_6] : memref<1x128xf32, #tpu.memory_space<vmem>>, vector<1x128xf32>
    %4 = vector.broadcast %1 : vector<128x1xf32> to vector<128x128xf32>
    %5 = vector.broadcast %3 : vector<1x128xf32> to vector<128x128xf32>
    %6 = arith.subf %4, %5 : vector<128x128xf32>
    %cst = arith.constant 0.000000e+00 : f32
    %7 = vector.broadcast %cst : f32 to vector<128x128xf32>
    %8 = arith.cmpf oge, %6, %7 : vector<128x128xf32>
    %cst_7 = arith.constant 0.707106769 : f32
    %cst_8 = arith.constant -0.707106769 : f32
    %9 = vector.broadcast %cst_7 : f32 to vector<128x128xf32>
    %10 = vector.broadcast %cst_8 : f32 to vector<128x128xf32>
    %11 = arith.select %8, %9, %10 : vector<128x128xi1>, vector<128x128xf32>
    %12 = vector.broadcast %0 : vector<128x1xf32> to vector<128x128xf32>
    %13 = vector.broadcast %2 : vector<1x128xf32> to vector<128x128xf32>
    %14 = arith.subf %12, %13 : vector<128x128xf32>
    %15 = arith.mulf %14, %11 : vector<128x128xf32>
    %16 = math.erf %15 : vector<128x128xf32>
    %cst_9 = arith.constant 5.000000e-01 : f32
    %17 = vector.broadcast %cst_9 : f32 to vector<128x128xf32>
    %18 = arith.mulf %17, %16 : vector<128x128xf32>
    %cst_10 = arith.constant 5.000000e-01 : f32
    %19 = vector.broadcast %cst_10 : f32 to vector<128x128xf32>
    %20 = arith.addf %19, %18 : vector<128x128xf32>
    %cst_11 = arith.constant 9.99999997E-7 : f32
    %21 = vector.broadcast %cst_11 : f32 to vector<128x128xf32>
    %22 = arith.addf %20, %21 : vector<128x128xf32>
    %23 = math.sqrt %22 : vector<128x128xf32>
    %c128_i32 = arith.constant 128 : i32
    %24 = arith.muli %arg1, %c128_i32 : i32
    %25 = tpu.iota {dimensions = array<i32: 1>} : vector<1x128xi32>
    %26 = vector.broadcast %24 : i32 to vector<1x128xi32>
    %27 = arith.addi %26, %25 : vector<1x128xi32>
    %c128_i32_12 = arith.constant 128 : i32
    %28 = arith.muli %arg0, %c128_i32_12 : i32
    %29 = tpu.iota {dimensions = array<i32: 0>} : vector<128x1xi32>
    %30 = vector.broadcast %28 : i32 to vector<128x1xi32>
    %31 = arith.addi %30, %29 : vector<128x1xi32>
    %c8_i32 = arith.constant 8 : i32
    %32 = vector.broadcast %c8_i32 : i32 to vector<1x128xi32>
    %33 = arith.cmpi slt, %27, %32 : vector<1x128xi32>
    %34 = arith.extui %33 : vector<1x128xi1> to vector<1x128xi32>
    %35 = arith.sitofp %34 : vector<1x128xi32> to vector<1x128xf32>
    %c8_i32_13 = arith.constant 8 : i32
    %36 = vector.broadcast %c8_i32_13 : i32 to vector<128x1xi32>
    %37 = arith.cmpi slt, %31, %36 : vector<128x1xi32>
    %38 = arith.extui %37 : vector<128x1xi1> to vector<128x1xi32>
    %39 = arith.sitofp %38 : vector<128x1xi32> to vector<128x1xf32>
    %40 = vector.broadcast %35 : vector<1x128xf32> to vector<128x128xf32>
    %41 = arith.mulf %23, %40 : vector<128x128xf32>
    %cst_14 = arith.constant dense<0.000000e+00> : vector<128xf32>
    %42 = vector.multi_reduction <add>, %41, %cst_14 [1] : vector<128x128xf32> to vector<128xf32>
    %43 = vector.shape_cast %42 : vector<128xf32> to vector<128x1xf32>
    %44 = arith.mulf %43, %39 : vector<128x1xf32>
    %cst_15 = arith.constant dense<0.000000e+00> : vector<1xf32>
    %45 = vector.multi_reduction <add>, %44, %cst_15 [0] : vector<128x1xf32> to vector<1xf32>
    %46 = vector.shape_cast %45 : vector<1xf32> to vector<1x1xf32>
    %c0_16 = arith.constant 0 : index
    %c0_17 = arith.constant 0 : index
    %c0_18 = arith.constant 0 : index
    %c0_19 = arith.constant 0 : index
    %47 = vector.load %arg6[%c0_16, %c0_17, %c0_18, %c0_19] : memref<1x1x1x1xf32, #tpu.memory_space<vmem>>, vector<1x1x1x1xf32>
    %48 = vector.shape_cast %47 : vector<1x1x1x1xf32> to vector<1x1xf32>
    %49 = vector.shape_cast %46 : vector<1x1xf32> to vector<1x1x1x1xf32>
    tpu.vector_store %arg6[%c0_16, %c0_17, %c0_18, %c0_19], %49 {strides = array<i32>} : memref<1x1x1x1xf32, #tpu.memory_space<vmem>>, vector<1x1x1x1xf32>,
    return
  }
  func.func @transform_0(%arg0: i32, %arg1: i32) -> (i32, i32) {
    %c0_i32 = arith.constant 0 : i32
    %c0_i32_0 = arith.constant 0 : i32
    return %arg0, %c0_i32 : i32, i32
  }
  func.func @transform_1(%arg0: i32, %arg1: i32) -> (i32, i32) {
    %c0_i32 = arith.constant 0 : i32
    %c0_i32_0 = arith.constant 0 : i32
    return %arg0, %c0_i32 : i32, i32
  }
  func.func @transform_2(%arg0: i32, %arg1: i32) -> (i32, i32) {
    %c0_i32 = arith.constant 0 : i32
    %c0_i32_0 = arith.constant 0 : i32
    return %c0_i32, %arg1 : i32, i32
  }
  func.func @transform_3(%arg0: i32, %arg1: i32) -> (i32, i32) {
    %c0_i32 = arith.constant 0 : i32
    %c0_i32_0 = arith.constant 0 : i32
    return %c0_i32, %arg1 : i32, i32
  }
  func.func @transform_4(%arg0: i32, %arg1: i32) -> (i32, i32, i32, i32) {
    %c0_i32 = arith.constant 0 : i32
    %c0_i32_0 = arith.constant 0 : i32
    %c0_i32_1 = arith.constant 0 : i32
    return %arg0, %arg1, %c0_i32, %c0_i32_0 : i32, i32, i32, i32
  }
}

</mosaic_0001>

<llo_original>
// kernel: tpu_custom_call.1
$region0: #{tpu_custom_call.1}
  #allocation0 [shape = 'u32[]', space=smem, size = 0x4, offset = 0x4, fixed_abs, tag = 'smem constant byte address 0x4 - core index']
  #allocation1 [shape = 'u32[144,128]{1,0:T(1,128)}', space=vmem, size = 0x12000, scoped, tag = 'internal scratch']
  %s0 = inlined_call_operand.vmem [shape: f32[128,1], index: 0, kind: input, shape index: {}]
  %s1 = inlined_call_operand.vmem [shape: f32[128,1], index: 1, kind: input, shape index: {}]
  %s2 = inlined_call_operand.vmem [shape: f32[1,128], index: 2, kind: input, shape index: {}]
  %s3 = inlined_call_operand.vmem [shape: f32[1,128], index: 3, kind: input, shape index: {}]
  %s4 = inlined_call_operand.hbm [shape: f32[1,1,1,1], index: 4, kind: output, shape index: {}]
  %s5 = sld [smem:[#allocation0]]
  $region26: #{tpu_custom_call.1} parent=0
    _
  %s7 = ssub.s32 1, %s5
  %s8 = scalar_select 0, %s7, %s5
  $region1: #{tpu_custom_call.1} parent=0
    #allocation2 [shape = 'u8[512]{0}', space=vmem, size = 0x400, scoped, tag = 'output window, operand 0, single buffered']
    #allocation3 [shape = 's32[1]{0}', space=sflag, size = 0x4, scoped, tag = 'scoped memory for tpu_custom_call.1']
    %9 = vsyncpa [#allocation3], 0
    // Predicated region
    $region2: #{tpu_custom_call.1} parent=1 // pred_check
      _
    $region3: #{tpu_custom_call.1} parent=1 // pred_check_branch
      %11 = sbr.rel (0) target = $region5
    $region4: #{tpu_custom_call.1} parent=1 // pred_region
      _
    $region5: #{tpu_custom_call.1} parent=1 // pred_fallthru
      _
    // Predicated region
    $region6: #{tpu_custom_call.1} parent=1 // pred_check
      _
    $region7: #{tpu_custom_call.1} parent=1 // pred_check_branch
      %13 = sbr.rel (0) target = $region9
    $region8: #{tpu_custom_call.1} parent=1 // pred_region
      _
    $region9: #{tpu_custom_call.1} parent=1 // pred_fallthru
      _
    // Predicated region
    $region10: #{tpu_custom_call.1} parent=1 // pred_check
      _
    $region11: #{tpu_custom_call.1} parent=1 // pred_check_branch
      %15 = sbr.rel (0) target = $region13
    $region12: #{tpu_custom_call.1} parent=1 // pred_region
      _
    $region13: #{tpu_custom_call.1} parent=1 // pred_fallthru
      _
    // Predicated region
    $region14: #{tpu_custom_call.1} parent=1 // pred_check
      _
    $region15: #{tpu_custom_call.1} parent=1 // pred_check_branch
      %17 = sbr.rel (0) target = $region17
    $region16: #{tpu_custom_call.1} parent=1 // pred_region
      _
    $region17: #{tpu_custom_call.1} parent=1 // pred_fallthru
      _
    %v18 = vld [vmem:[%s0] sm:$0xff]
    %v19 = vld [vmem:[%s0 + $0x8] sm:$0xff]
    %v20 = vld [vmem:[%s0 + $0x10] sm:$0xff]
    %v21 = vld [vmem:[%s0 + $0x18] sm:$0xff]
    %v22 = vld [vmem:[%s0 + $0x20] sm:$0xff]
    %v23 = vld [vmem:[%s0 + $0x28] sm:$0xff]
    %v24 = vld [vmem:[%s0 + $0x30] sm:$0xff]
    %v25 = vld [vmem:[%s0 + $0x38] sm:$0xff]
    %v26 = vld [vmem:[%s0 + $0x40] sm:$0xff]
    %v27 = vld [vmem:[%s0 + $0x48] sm:$0xff]
    %v28 = vld [vmem:[%s0 + $0x50] sm:$0xff]
    %v29 = vld [vmem:[%s0 + $0x58] sm:$0xff]
    %v30 = vld [vmem:[%s0 + $0x60] sm:$0xff]
    %v31 = vld [vmem:[%s0 + $0x68] sm:$0xff]
    %v32 = vld [vmem:[%s0 + $0x70] sm:$0xff]
    %v33 = vld [vmem:[%s0 + $0x78] sm:$0xff]
    %v34 = vld [vmem:[%s1] sm:$0xff]
    %v35 = vld [vmem:[%s1 + $0x8] sm:$0xff]
    %v36 = vld [vmem:[%s1 + $0x10] sm:$0xff]
    %v37 = vld [vmem:[%s1 + $0x18] sm:$0xff]
    %v38 = vld [vmem:[%s1 + $0x20] sm:$0xff]
    %v39 = vld [vmem:[%s1 + $0x28] sm:$0xff]
    %v40 = vld [vmem:[%s1 + $0x30] sm:$0xff]
    %v41 = vld [vmem:[%s1 + $0x38] sm:$0xff]
    %v42 = vld [vmem:[%s1 + $0x40] sm:$0xff]
    %v43 = vld [vmem:[%s1 + $0x48] sm:$0xff]
    %v44 = vld [vmem:[%s1 + $0x50] sm:$0xff]
    %v45 = vld [vmem:[%s1 + $0x58] sm:$0xff]
    %v46 = vld [vmem:[%s1 + $0x60] sm:$0xff]
    %v47 = vld [vmem:[%s1 + $0x68] sm:$0xff]
    %v48 = vld [vmem:[%s1 + $0x70] sm:$0xff]
    %v49 = vld [vmem:[%s1 + $0x78] sm:$0xff]
    %v50 = vld [vmem:[%s2] sm:$0x1]
    %v51 = vld [vmem:[%s3] sm:$0x1]
    %53 = vset.pattern.permute.xlu0 0
    %54 = vperm.xlu0 %53, %v34
    %v55 = vpop.permute.xlu0 %54
    %58 = vset.pattern.permute.xlu0 0
    %59 = vperm.xlu0 %58, %v35
    %v60 = vpop.permute.xlu0 %59
    %63 = vset.pattern.permute.xlu0 0
    %64 = vperm.xlu0 %63, %v36
    %v65 = vpop.permute.xlu0 %64
    %68 = vset.pattern.permute.xlu0 0
    %69 = vperm.xlu0 %68, %v37
    %v70 = vpop.permute.xlu0 %69
    %73 = vset.pattern.permute.xlu0 0
    %74 = vperm.xlu0 %73, %v38
    %v75 = vpop.permute.xlu0 %74
    %78 = vset.pattern.permute.xlu0 0
    %79 = vperm.xlu0 %78, %v39
    %v80 = vpop.permute.xlu0 %79
    %83 = vset.pattern.permute.xlu0 0
    %84 = vperm.xlu0 %83, %v40
    %v85 = vpop.permute.xlu0 %84
    %88 = vset.pattern.permute.xlu0 0
    %89 = vperm.xlu0 %88, %v41
    %v90 = vpop.permute.xlu0 %89
    %93 = vset.pattern.permute.xlu0 0
    %94 = vperm.xlu0 %93, %v42
    %v95 = vpop.permute.xlu0 %94
    %98 = vset.pattern.permute.xlu0 0
    %99 = vperm.xlu0 %98, %v43
    %v100 = vpop.permute.xlu0 %99
    %103 = vset.pattern.permute.xlu0 0
    %104 = vperm.xlu0 %103, %v44
    %v105 = vpop.permute.xlu0 %104
    %108 = vset.pattern.permute.xlu0 0
    %109 = vperm.xlu0 %108, %v45
    %v110 = vpop.permute.xlu0 %109
    %113 = vset.pattern.permute.xlu0 0
    %114 = vperm.xlu0 %113, %v46
    %v115 = vpop.permute.xlu0 %114
    %118 = vset.pattern.permute.xlu0 0
    %119 = vperm.xlu0 %118, %v47
    %v120 = vpop.permute.xlu0 %119
    %123 = vset.pattern.permute.xlu0 0
    %124 = vperm.xlu0 %123, %v48
    %v125 = vpop.permute.xlu0 %124
    %128 = vset.pattern.permute.xlu0 0
    %129 = vperm.xlu0 %128, %v49
    %v130 = vpop.permute.xlu0 %129
    %v133 = vlaneseq
    %v134 = vshrl.u32 %v133, 7
    %v135 = vsub.s32 0, %v134
    %v136 = vrot.slane %v51, %v135
    %v138 = vsub.f32 %v55, %v136
    %v139 = vsub.f32 %v60, %v136
    %v140 = vsub.f32 %v65, %v136
    %v141 = vsub.f32 %v70, %v136
    %v142 = vsub.f32 %v75, %v136
    %v143 = vsub.f32 %v80, %v136
    %v144 = vsub.f32 %v85, %v136
    %v145 = vsub.f32 %v90, %v136
    %v146 = vsub.f32 %v95, %v136
    %v147 = vsub.f32 %v100, %v136
    %v148 = vsub.f32 %v105, %v136
    %v149 = vsub.f32 %v110, %v136
    %v150 = vsub.f32 %v115, %v136
    %v151 = vsub.f32 %v120, %v136
    %v152 = vsub.f32 %v125, %v136
    %v153 = vsub.f32 %v130, %v136
    %vm154 = vcmp.ge.f32.partialorder %v138, 0.0
    %vm155 = vcmp.ge.f32.partialorder %v139, 0.0
    %vm156 = vcmp.ge.f32.partialorder %v140, 0.0
    %vm157 = vcmp.ge.f32.partialorder %v141, 0.0
    %vm158 = vcmp.ge.f32.partialorder %v142, 0.0
    %vm159 = vcmp.ge.f32.partialorder %v143, 0.0
    %vm160 = vcmp.ge.f32.partialorder %v144, 0.0
    %vm161 = vcmp.ge.f32.partialorder %v145, 0.0
    %vm162 = vcmp.ge.f32.partialorder %v146, 0.0
    %vm163 = vcmp.ge.f32.partialorder %v147, 0.0
    %vm164 = vcmp.ge.f32.partialorder %v148, 0.0
    %vm165 = vcmp.ge.f32.partialorder %v149, 0.0
    %vm166 = vcmp.ge.f32.partialorder %v150, 0.0
    %vm167 = vcmp.ge.f32.partialorder %v151, 0.0
    %vm168 = vcmp.ge.f32.partialorder %v152, 0.0
    %vm169 = vcmp.ge.f32.partialorder %v153, 0.0
    %v170 = vsel %vm154, 0.70710677, -0.70710677
    %v171 = vsel %vm155, 0.70710677, -0.70710677
    %v172 = vsel %vm156, 0.70710677, -0.70710677
    %v173 = vsel %vm157, 0.70710677, -0.70710677
    %v174 = vsel %vm158, 0.70710677, -0.70710677
    %v175 = vsel %vm159, 0.70710677, -0.70710677
    %v176 = vsel %vm160, 0.70710677, -0.70710677
    %v177 = vsel %vm161, 0.70710677, -0.70710677
    %v178 = vsel %vm162, 0.70710677, -0.70710677
    %v179 = vsel %vm163, 0.70710677, -0.70710677
    %v180 = vsel %vm164, 0.70710677, -0.70710677
    %v181 = vsel %vm165, 0.70710677, -0.70710677
    %v182 = vsel %vm166, 0.70710677, -0.70710677
    %v183 = vsel %vm167, 0.70710677, -0.70710677
    %v184 = vsel %vm168, 0.70710677, -0.70710677
    %v185 = vsel %vm169, 0.70710677, -0.70710677
    %187 = vset.pattern.permute.xlu0 0
    %188 = vperm.xlu0 %187, %v18
    %v189 = vpop.permute.xlu0 %188
    %192 = vset.pattern.permute.xlu0 0
    %193 = vperm.xlu0 %192, %v19
    %v194 = vpop.permute.xlu0 %193
    %197 = vset.pattern.permute.xlu0 0
    %198 = vperm.xlu0 %197, %v20
    %v199 = vpop.permute.xlu0 %198
    %202 = vset.pattern.permute.xlu0 0
    %203 = vperm.xlu0 %202, %v21
    %v204 = vpop.permute.xlu0 %203
    %207 = vset.pattern.permute.xlu0 0
    %208 = vperm.xlu0 %207, %v22
    %v209 = vpop.permute.xlu0 %208
    %212 = vset.pattern.permute.xlu0 0
    %213 = vperm.xlu0 %212, %v23
    %v214 = vpop.permute.xlu0 %213
    %217 = vset.pattern.permute.xlu0 0
    %218 = vperm.xlu0 %217, %v24
    %v219 = vpop.permute.xlu0 %218
    %222 = vset.pattern.permute.xlu0 0
    %223 = vperm.xlu0 %222, %v25
    %v224 = vpop.permute.xlu0 %223
    %227 = vset.pattern.permute.xlu0 0
    %228 = vperm.xlu0 %227, %v26
    %v229 = vpop.permute.xlu0 %228
    %232 = vset.pattern.permute.xlu0 0
    %233 = vperm.xlu0 %232, %v27
    %v234 = vpop.permute.xlu0 %233
    %237 = vset.pattern.permute.xlu0 0
    %238 = vperm.xlu0 %237, %v28
    %v239 = vpop.permute.xlu0 %238
    %242 = vset.pattern.permute.xlu0 0
    %243 = vperm.xlu0 %242, %v29
    %v244 = vpop.permute.xlu0 %243
    %247 = vset.pattern.permute.xlu0 0
    %248 = vperm.xlu0 %247, %v30
    %v249 = vpop.permute.xlu0 %248
    %252 = vset.pattern.permute.xlu0 0
    %253 = vperm.xlu0 %252, %v31
    %v254 = vpop.permute.xlu0 %253
    %257 = vset.pattern.permute.xlu0 0
    %258 = vperm.xlu0 %257, %v32
    %v259 = vpop.permute.xlu0 %258
    %262 = vset.pattern.permute.xlu0 0
    %263 = vperm.xlu0 %262, %v33
    %v264 = vpop.permute.xlu0 %263
    %v267 = vlaneseq
    %v268 = vshrl.u32 %v267, 7
    %v269 = vsub.s32 0, %v268
    %v270 = vrot.slane %v50, %v269
    %v272 = vsub.f32 %v189, %v270
    %v273 = vsub.f32 %v194, %v270
    %v274 = vsub.f32 %v199, %v270
    %v275 = vsub.f32 %v204, %v270
    %v276 = vsub.f32 %v209, %v270
    %v277 = vsub.f32 %v214, %v270
    %v278 = vsub.f32 %v219, %v270
    %v279 = vsub.f32 %v224, %v270
    %v280 = vsub.f32 %v229, %v270
    %v281 = vsub.f32 %v234, %v270
    %v282 = vsub.f32 %v239, %v270
    %v283 = vsub.f32 %v244, %v270
    %v284 = vsub.f32 %v249, %v270
    %v285 = vsub.f32 %v254, %v270
    %v286 = vsub.f32 %v259, %v270
    %v287 = vsub.f32 %v264, %v270
    %v288 = vmul.f32 %v272, %v170
    %v289 = vmul.f32 %v273, %v171
    %v290 = vmul.f32 %v274, %v172
    %v291 = vmul.f32 %v275, %v173
    %v292 = vmul.f32 %v276, %v174
    %v293 = vmul.f32 %v277, %v175
    %v294 = vmul.f32 %v278, %v176
    %v295 = vmul.f32 %v279, %v177
    %v296 = vmul.f32 %v280, %v178
    %v297 = vmul.f32 %v281, %v179
    %v298 = vmul.f32 %v282, %v180
    %v299 = vmul.f32 %v283, %v181
    %v300 = vmul.f32 %v284, %v182
    %v301 = vmul.f32 %v285, %v183
    %v302 = vmul.f32 %v286, %v184
    %v303 = vmul.f32 %v287, %v185
    %v304 = verf.f32.pop %v288
    %v305 = verf.f32.pop %v289
    %v306 = verf.f32.pop %v290
    %v307 = verf.f32.pop %v291
    %v308 = verf.f32.pop %v292
    %v309 = verf.f32.pop %v293
    %v310 = verf.f32.pop %v294
    %v311 = verf.f32.pop %v295
    %v312 = verf.f32.pop %v296
    %v313 = verf.f32.pop %v297
    %v314 = verf.f32.pop %v298
    %v315 = verf.f32.pop %v299
    %v316 = verf.f32.pop %v300
    %v317 = verf.f32.pop %v301
    %v318 = verf.f32.pop %v302
    %v319 = verf.f32.pop %v303
    %v320 = vmul.f32 %v304, 0.5
    %v321 = vmul.f32 %v305, 0.5
    %v322 = vmul.f32 %v306, 0.5
    %v323 = vmul.f32 %v307, 0.5
    %v324 = vmul.f32 %v308, 0.5
    %v325 = vmul.f32 %v309, 0.5
    %v326 = vmul.f32 %v310, 0.5
    %v327 = vmul.f32 %v311, 0.5
    %v328 = vmul.f32 %v312, 0.5
    %v329 = vmul.f32 %v313, 0.5
    %v330 = vmul.f32 %v314, 0.5
    %v331 = vmul.f32 %v315, 0.5
    %v332 = vmul.f32 %v316, 0.5
    %v333 = vmul.f32 %v317, 0.5
    %v334 = vmul.f32 %v318, 0.5
    %v335 = vmul.f32 %v319, 0.5
    %v336 = vadd.f32 %v320, 0.5
    %v337 = vadd.f32 %v321, 0.5
    %v338 = vadd.f32 %v322, 0.5
    %v339 = vadd.f32 %v323, 0.5
    %v340 = vadd.f32 %v324, 0.5
    %v341 = vadd.f32 %v325, 0.5
    %v342 = vadd.f32 %v326, 0.5
    %v343 = vadd.f32 %v327, 0.5
    %v344 = vadd.f32 %v328, 0.5
    %v345 = vadd.f32 %v329, 0.5
    %v346 = vadd.f32 %v330, 0.5
    %v347 = vadd.f32 %v331, 0.5
    %v348 = vadd.f32 %v332, 0.5
    %v349 = vadd.f32 %v333, 0.5
    %v350 = vadd.f32 %v334, 0.5
    %v351 = vadd.f32 %v335, 0.5
    %v352 = vadd.f32 %v336, 1e-06
    %v353 = vadd.f32 %v337, 1e-06
    %v354 = vadd.f32 %v338, 1e-06
    %v355 = vadd.f32 %v339, 1e-06
    %v356 = vadd.f32 %v340, 1e-06
    %v357 = vadd.f32 %v341, 1e-06
    %v358 = vadd.f32 %v342, 1e-06
    %v359 = vadd.f32 %v343, 1e-06
    %v360 = vadd.f32 %v344, 1e-06
    %v361 = vadd.f32 %v345, 1e-06
    %v362 = vadd.f32 %v346, 1e-06
    %v363 = vadd.f32 %v347, 1e-06
    %v364 = vadd.f32 %v348, 1e-06
    %v365 = vadd.f32 %v349, 1e-06
    %v366 = vadd.f32 %v350, 1e-06
    %v367 = vadd.f32 %v351, 1e-06
    %v368 = vrsqrt.pop %v352
    %v369 = vmul.f32 %v352, %v368
    %vm370 = vcmp.eq.f32.partialorder %v352, inf
    %v371 = vsel %vm370, %v352, %v369
    %vm372 = vcmp.eq.f32.partialorder %v352, 0.0
    %v373 = vand.u32 %v352, 2147483648
    %v374 = vsel %vm372, %v373, %v371
    %v375 = vrsqrt.pop %v353
    %v376 = vmul.f32 %v353, %v375
    %vm377 = vcmp.eq.f32.partialorder %v353, inf
    %v378 = vsel %vm377, %v353, %v376
    %vm379 = vcmp.eq.f32.partialorder %v353, 0.0
    %v380 = vand.u32 %v353, 2147483648
    %v381 = vsel %vm379, %v380, %v378
    %v382 = vrsqrt.pop %v354
    %v383 = vmul.f32 %v354, %v382
    %vm384 = vcmp.eq.f32.partialorder %v354, inf
    %v385 = vsel %vm384, %v354, %v383
    %vm386 = vcmp.eq.f32.partialorder %v354, 0.0
    %v387 = vand.u32 %v354, 2147483648
    %v388 = vsel %vm386, %v387, %v385
    %v389 = vrsqrt.pop %v355
    %v390 = vmul.f32 %v355, %v389
    %vm391 = vcmp.eq.f32.partialorder %v355, inf
    %v392 = vsel %vm391, %v355, %v390
    %vm393 = vcmp.eq.f32.partialorder %v355, 0.0
    %v394 = vand.u32 %v355, 2147483648
    %v395 = vsel %vm393, %v394, %v392
    %v396 = vrsqrt.pop %v356
    %v397 = vmul.f32 %v356, %v396
    %vm398 = vcmp.eq.f32.partialorder %v356, inf
    %v399 = vsel %vm398, %v356, %v397
    %vm400 = vcmp.eq.f32.partialorder %v356, 0.0
    %v401 = vand.u32 %v356, 2147483648
    %v402 = vsel %vm400, %v401, %v399
    %v403 = vrsqrt.pop %v357
    %v404 = vmul.f32 %v357, %v403
    %vm405 = vcmp.eq.f32.partialorder %v357, inf
    %v406 = vsel %vm405, %v357, %v404
    %vm407 = vcmp.eq.f32.partialorder %v357, 0.0
    %v408 = vand.u32 %v357, 2147483648
    %v409 = vsel %vm407, %v408, %v406
    %v410 = vrsqrt.pop %v358
    %v411 = vmul.f32 %v358, %v410
    %vm412 = vcmp.eq.f32.partialorder %v358, inf
    %v413 = vsel %vm412, %v358, %v411
    %vm414 = vcmp.eq.f32.partialorder %v358, 0.0
    %v415 = vand.u32 %v358, 2147483648
    %v416 = vsel %vm414, %v415, %v413
    %v417 = vrsqrt.pop %v359
    %v418 = vmul.f32 %v359, %v417
    %vm419 = vcmp.eq.f32.partialorder %v359, inf
    %v420 = vsel %vm419, %v359, %v418
    %vm421 = vcmp.eq.f32.partialorder %v359, 0.0
    %v422 = vand.u32 %v359, 2147483648
    %v423 = vsel %vm421, %v422, %v420
    %v424 = vrsqrt.pop %v360
    %v425 = vmul.f32 %v360, %v424
    %vm426 = vcmp.eq.f32.partialorder %v360, inf
    %v427 = vsel %vm426, %v360, %v425
    %vm428 = vcmp.eq.f32.partialorder %v360, 0.0
    %v429 = vand.u32 %v360, 2147483648
    %v430 = vsel %vm428, %v429, %v427
    %v431 = vrsqrt.pop %v361
    %v432 = vmul.f32 %v361, %v431
    %vm433 = vcmp.eq.f32.partialorder %v361, inf
    %v434 = vsel %vm433, %v361, %v432
    %vm435 = vcmp.eq.f32.partialorder %v361, 0.0
    %v436 = vand.u32 %v361, 2147483648
    %v437 = vsel %vm435, %v436, %v434
    %v438 = vrsqrt.pop %v362
    %v439 = vmul.f32 %v362, %v438
    %vm440 = vcmp.eq.f32.partialorder %v362, inf
    %v441 = vsel %vm440, %v362, %v439
    %vm442 = vcmp.eq.f32.partialorder %v362, 0.0
    %v443 = vand.u32 %v362, 2147483648
    %v444 = vsel %vm442, %v443, %v441
    %v445 = vrsqrt.pop %v363
    %v446 = vmul.f32 %v363, %v445
    %vm447 = vcmp.eq.f32.partialorder %v363, inf
    %v448 = vsel %vm447, %v363, %v446
    %vm449 = vcmp.eq.f32.partialorder %v363, 0.0
    %v450 = vand.u32 %v363, 2147483648
    %v451 = vsel %vm449, %v450, %v448
    %v452 = vrsqrt.pop %v364
    %v453 = vmul.f32 %v364, %v452
    %vm454 = vcmp.eq.f32.partialorder %v364, inf
    %v455 = vsel %vm454, %v364, %v453
    %vm456 = vcmp.eq.f32.partialorder %v364, 0.0
    %v457 = vand.u32 %v364, 2147483648
    %v458 = vsel %vm456, %v457, %v455
    %v459 = vrsqrt.pop %v365
    %v460 = vmul.f32 %v365, %v459
    %vm461 = vcmp.eq.f32.partialorder %v365, inf
    %v462 = vsel %vm461, %v365, %v460
    %vm463 = vcmp.eq.f32.partialorder %v365, 0.0
    %v464 = vand.u32 %v365, 2147483648
    %v465 = vsel %vm463, %v464, %v462
    %v466 = vrsqrt.pop %v366
    %v467 = vmul.f32 %v366, %v466
    %vm468 = vcmp.eq.f32.partialorder %v366, inf
    %v469 = vsel %vm468, %v366, %v467
    %vm470 = vcmp.eq.f32.partialorder %v366, 0.0
    %v471 = vand.u32 %v366, 2147483648
    %v472 = vsel %vm470, %v471, %v469
    %v473 = vrsqrt.pop %v367
    %v474 = vmul.f32 %v367, %v473
    %vm475 = vcmp.eq.f32.partialorder %v367, inf
    %v476 = vsel %vm475, %v367, %v474
    %vm477 = vcmp.eq.f32.partialorder %v367, 0.0
    %v478 = vand.u32 %v367, 2147483648
    %v479 = vsel %vm477, %v478, %v476
    %s480 = smul.u32 0, 128
    %v481 = vlaneseq
    %v482 = vand.u32 %v481, 127
    %v483 = vstv %s480
    %v484 = vadd.s32 %v483, %v482
    %s485 = smul.u32 0, 128
    %v486 = vlaneseq
    %v487 = vshrl.u32 %v486, 7
    %v488 = vadd.s32 %v487, 8
    %v489 = vadd.s32 %v487, 16
    %v490 = vadd.s32 %v487, 24
    %v491 = vadd.s32 %v487, 32
    %v492 = vadd.s32 %v487, 40
    %v493 = vadd.s32 %v487, 48
    %v494 = vadd.s32 %v487, 56
    %v495 = vadd.s32 %v487, 64
    %v496 = vadd.s32 %v487, 72
    %v497 = vadd.s32 %v487, 80
    %v498 = vadd.s32 %v487, 88
    %v499 = vadd.s32 %v487, 96
    %v500 = vadd.s32 %v487, 104
    %v501 = vadd.s32 %v487, 112
    %v502 = vadd.s32 %v487, 120
    %v503 = vstv %s485
    %v504 = vadd.s32 %v503, %v487
    %v505 = vadd.s32 %v503, %v488
    %v506 = vadd.s32 %v503, %v489
    %v507 = vadd.s32 %v503, %v490
    %v508 = vadd.s32 %v503, %v491
    %v509 = vadd.s32 %v503, %v492
    %v510 = vadd.s32 %v503, %v493
    %v511 = vadd.s32 %v503, %v494
    %v512 = vadd.s32 %v503, %v495
    %v513 = vadd.s32 %v503, %v496
    %v514 = vadd.s32 %v503, %v497
    %v515 = vadd.s32 %v503, %v498
    %v516 = vadd.s32 %v503, %v499
    %v517 = vadd.s32 %v503, %v500
    %v518 = vadd.s32 %v503, %v501
    %v519 = vadd.s32 %v503, %v502
    %vm520 = vcmp.lt.s32.totalorder %v484, 8
    %v521 = vsel %vm520, 1, 0
    %v522 = vcvt.s32.f32 %v521
    %vm523 = vcmp.lt.s32.totalorder %v504, 8
    %vm524 = vcmp.lt.s32.totalorder %v505, 8
    %vm525 = vcmp.lt.s32.totalorder %v506, 8
    %vm526 = vcmp.lt.s32.totalorder %v507, 8
    %vm527 = vcmp.lt.s32.totalorder %v508, 8
    %vm528 = vcmp.lt.s32.totalorder %v509, 8
    %vm529 = vcmp.lt.s32.totalorder %v510, 8
    %vm530 = vcmp.lt.s32.totalorder %v511, 8
    %vm531 = vcmp.lt.s32.totalorder %v512, 8
    %vm532 = vcmp.lt.s32.totalorder %v513, 8
    %vm533 = vcmp.lt.s32.totalorder %v514, 8
    %vm534 = vcmp.lt.s32.totalorder %v515, 8
    %vm535 = vcmp.lt.s32.totalorder %v516, 8
    %vm536 = vcmp.lt.s32.totalorder %v517, 8
    %vm537 = vcmp.lt.s32.totalorder %v518, 8
    %vm538 = vcmp.lt.s32.totalorder %v519, 8
    %v539 = vsel %vm523, 1, 0
    %v540 = vsel %vm524, 1, 0
    %v541 = vsel %vm525, 1, 0
    %v542 = vsel %vm526, 1, 0
    %v543 = vsel %vm527, 1, 0
    %v544 = vsel %vm528, 1, 0
    %v545 = vsel %vm529, 1, 0
    %v546 = vsel %vm530, 1, 0
    %v547 = vsel %vm531, 1, 0
    %v548 = vsel %vm532, 1, 0
    %v549 = vsel %vm533, 1, 0
    %v550 = vsel %vm534, 1, 0
    %v551 = vsel %vm535, 1, 0
    %v552 = vsel %vm536, 1, 0
    %v553 = vsel %vm537, 1, 0
    %v554 = vsel %vm538, 1, 0
    %v555 = vcvt.s32.f32 %v539
    %v556 = vcvt.s32.f32 %v540
    %v557 = vcvt.s32.f32 %v541
    %v558 = vcvt.s32.f32 %v542
    %v559 = vcvt.s32.f32 %v543
    %v560 = vcvt.s32.f32 %v544
    %v561 = vcvt.s32.f32 %v545
    %v562 = vcvt.s32.f32 %v546
    %v563 = vcvt.s32.f32 %v547
    %v564 = vcvt.s32.f32 %v548
    %v565 = vcvt.s32.f32 %v549
    %v566 = vcvt.s32.f32 %v550
    %v567 = vcvt.s32.f32 %v551
    %v568 = vcvt.s32.f32 %v552
    %v569 = vcvt.s32.f32 %v553
    %v570 = vcvt.s32.f32 %v554
    %v571 = vmul.f32 %v374, %v522
    %v572 = vmul.f32 %v381, %v522
    %v573 = vmul.f32 %v388, %v522
    %v574 = vmul.f32 %v395, %v522
    %v575 = vmul.f32 %v402, %v522
    %v576 = vmul.f32 %v409, %v522
    %v577 = vmul.f32 %v416, %v522
    %v578 = vmul.f32 %v423, %v522
    %v579 = vmul.f32 %v430, %v522
    %v580 = vmul.f32 %v437, %v522
    %v581 = vmul.f32 %v444, %v522
    %v582 = vmul.f32 %v451, %v522
    %v583 = vmul.f32 %v458, %v522
    %v584 = vmul.f32 %v465, %v522
    %v585 = vmul.f32 %v472, %v522
    %v586 = vmul.f32 %v479, %v522
    %587 = vadd.xlane.f32.xlu0 %v571
    %v588 = vpop.xlane.xlu0 %587
    %589 = vadd.xlane.f32.xlu0 %v572
    %v590 = vpop.xlane.xlu0 %589
    %591 = vadd.xlane.f32.xlu0 %v573
    %v592 = vpop.xlane.xlu0 %591
    %593 = vadd.xlane.f32.xlu0 %v574
    %v594 = vpop.xlane.xlu0 %593
    %595 = vadd.xlane.f32.xlu0 %v575
    %v596 = vpop.xlane.xlu0 %595
    %597 = vadd.xlane.f32.xlu0 %v576
    %v598 = vpop.xlane.xlu0 %597
    %599 = vadd.xlane.f32.xlu0 %v577
    %v600 = vpop.xlane.xlu0 %599
    %601 = vadd.xlane.f32.xlu0 %v578
    %v602 = vpop.xlane.xlu0 %601
    %603 = vadd.xlane.f32.xlu0 %v579
    %v604 = vpop.xlane.xlu0 %603
    %605 = vadd.xlane.f32.xlu0 %v580
    %v606 = vpop.xlane.xlu0 %605
    %607 = vadd.xlane.f32.xlu0 %v581
    %v608 = vpop.xlane.xlu0 %607
    %609 = vadd.xlane.f32.xlu0 %v582
    %v610 = vpop.xlane.xlu0 %609
    %611 = vadd.xlane.f32.xlu0 %v583
    %v612 = vpop.xlane.xlu0 %611
    %613 = vadd.xlane.f32.xlu0 %v584
    %v614 = vpop.xlane.xlu0 %613
    %615 = vadd.xlane.f32.xlu0 %v585
    %v616 = vpop.xlane.xlu0 %615
    %617 = vadd.xlane.f32.xlu0 %v586
    %v618 = vpop.xlane.xlu0 %617
    %v619 = vmul.f32 %v588, %v555
    %v620 = vmul.f32 %v590, %v556
    %v621 = vmul.f32 %v592, %v557
    %v622 = vmul.f32 %v594, %v558
    %v623 = vmul.f32 %v596, %v559
    %v624 = vmul.f32 %v598, %v560
    %v625 = vmul.f32 %v600, %v561
    %v626 = vmul.f32 %v602, %v562
    %v627 = vmul.f32 %v604, %v563
    %v628 = vmul.f32 %v606, %v564
    %v629 = vmul.f32 %v608, %v565
    %v630 = vmul.f32 %v610, %v566
    %v631 = vmul.f32 %v612, %v567
    %v632 = vmul.f32 %v614, %v568
    %v633 = vmul.f32 %v616, %v569
    %v634 = vmul.f32 %v618, %v570
    %v635 = vadd.f32 %v619, %v620
    %v636 = vadd.f32 %v635, %v621
    %v637 = vadd.f32 %v636, %v622
    %v638 = vadd.f32 %v637, %v623
    %v639 = vadd.f32 %v638, %v624
    %v640 = vadd.f32 %v639, %v625
    %v641 = vadd.f32 %v640, %v626
    %v642 = vadd.f32 %v641, %v627
    %v643 = vadd.f32 %v642, %v628
    %v644 = vadd.f32 %v643, %v629
    %v645 = vadd.f32 %v644, %v630
    %v646 = vadd.f32 %v645, %v631
    %v647 = vadd.f32 %v646, %v632
    %v648 = vadd.f32 %v647, %v633
    %v649 = vadd.f32 %v648, %v634
    %v650 = vrot.slane %v649, 4
    %v651 = vadd.f32 %v649, %v650
    %v652 = vrot.slane %v651, 2
    %v653 = vadd.f32 %v651, %v652
    %v654 = vrot.slane %v653, 1
    %v655 = vadd.f32 %v653, %v654
    %vm656 = vcmask 0
    %657 = vst.msk [vmem:[#allocation2] sm:$0x1] %vm656, %v655
    // Predicated region
    $region18: #{tpu_custom_call.1} parent=1 // pred_check
      _
    $region19: #{tpu_custom_call.1} parent=1 // pred_check_branch
      %659 = sbr.rel (0) target = $region21
    $region20: #{tpu_custom_call.1} parent=1 // pred_region
      %s661 = ssub.s32 16, 16
      %662 = vsyncadd [#allocation3], %s661
      %s664 = sshll.u32 [#allocation2], 4
      %s665 = int_to_ptr.vmem [resolvable:$true] %s664
      %667 = dma.vmem_to_hbm [thread:$0]  %s665, 16, %s4, [#allocation3]
    $region21: #{tpu_custom_call.1} parent=1 // pred_fallthru
      _
    // Predicated region
    $region22: #{tpu_custom_call.1} parent=1 // pred_check
      _
    $region23: #{tpu_custom_call.1} parent=1 // pred_check_branch
      %669 = sbr.rel (0) target = $region25
    $region24: #{tpu_custom_call.1} parent=1 // pred_region
      %670 = dma.done [#allocation3], 16
    $region25: #{tpu_custom_call.1} parent=1 // pred_fallthru
      _
    %671 = vsyncpa [#allocation3], 1

</llo_original>
